<compile_context>
chip_gen: v6e
topology: v6e:2x2x1
jax: 0.10.0
libtpu: 0.0.40
codegen_flags: <defaults>
</compile_context>

<pallas_src>
import functools

import jax
import jax.numpy as jnp
from jax.experimental import pallas as pl
from jax.experimental.pallas import tpu as pltpu

LEAKY_SLOPE = 0.01  # nn.LeakyReLU() default negative_slope


def _leaky_relu(x):
    # Identical to where(x > 0, x, slope * x) for 0 < slope < 1; one fewer VPU op.
    return jnp.maximum(x, LEAKY_SLOPE * x)


def _round_up(x, m):
    return (x + m - 1) // m * m


def _cdiv(a, b):
    return -(-a // b)


def _make_kernel(use_bf16):
    """Fused 4-layer MLP on one batch tile. All weights resident in VMEM."""

    def kernel(z_ref,
               w0_ref, b0_ref,
               w1_ref, b1_ref,
               w2_ref, b2_ref,
               w3_ref, b3_ref,
               out_ref):
        def linear(h, w_ref, b_ref):
            if use_bf16:
                h = h.astype(jnp.bfloat16)  # bf16 x bf16 -> f32 acc (single MXU pass)
            return (jnp.dot(h, w_ref[...], preferred_element_type=jnp.float32)
                    + b_ref[...])

        h = z_ref[...]  # f32 input tile
        h = _leaky_relu(linear(h, w0_ref, b0_ref))
        h = _leaky_relu(linear(h, w1_ref, b1_ref))
        h = _leaky_relu(linear(h, w2_ref, b2_ref))
        out_ref[...] = linear(h, w3_ref, b3_ref).astype(out_ref.dtype)

    return kernel


@functools.partial(jax.jit, static_argnames=("batch_tile", "use_bf16"))
def mapping_forward(z, params, batch_tile=None, use_bf16=True):
    """Pallas-backed forward pass of `Mapping`.

    z: [B, dim_z] float32
    params: dict with 'w0'..'w3' ([in, out]) and 'b0'..'b3' ([1, out]), f32.
    batch_tile: rows per grid step; chosen adaptively if None.
    use_bf16: cast matmul operands to bf16 (f32 accumulate). False = exact f32.
    """
    B, dim_z = z.shape
    dim_code = params["w3"].shape[1]

    # ---- adaptive batch tiling -------------------------------------------
    if batch_tile is None:
        if B <= 256:
            batch_tile = _round_up(B, 8)                # single grid step
        elif B <= 2048:
            batch_tile = _round_up(_cdiv(B, 2), 8)      # 2 steps -> both v7x TCs
        else:
            batch_tile = 1024                           # big tiles, few steps
    else:
        batch_tile = _round_up(batch_tile, 8)
    grid = (_cdiv(B, batch_tile),)                      # ragged last block handled by Pallas

    # ---- weight preparation ----------------------------------------------
    # Zero-pad layer-0 width 64 -> 128 (exact: zero cols stay zero through
    # LeakyReLU and contribute nothing through the padded w1 rows).
    w0, b0, w1 = params["w0"], params["b0"], params["w1"]
    h0 = w0.shape[1]
    h0_pad = _round_up(h0, 128) - h0
    if h0_pad:
        w0 = jnp.pad(w0, ((0, 0), (0, h0_pad)))
        b0 = jnp.pad(b0, ((0, 0), (0, h0_pad)))
        w1 = jnp.pad(w1, ((0, h0_pad), (0, 0)))

    ws = [w0, w1, params["w2"], params["w3"]]
    bs = [b0, params["b1"], params["b2"], params["b3"]]
    if use_bf16:
        ws = [w.astype(jnp.bfloat16) for w in ws]       # biases stay f32

    # Weights/biases are passed whole (block == full array); only the batch
    # dimension is tiled by the grid.
    def full_spec(arr):
        return pl.BlockSpec(arr.shape, lambda i: (0, 0))

    in_specs = [pl.BlockSpec((batch_tile, dim_z), lambda i: (i, 0))]
    args = [z]
    for w, b in zip(ws, bs):
        in_specs += [full_spec(w), full_spec(b)]
        args += [w, b]

    out = pl.pallas_call(
        _make_kernel(use_bf16),
        out_shape=jax.ShapeDtypeStruct((B, dim_code), z.dtype),
        grid=grid,
        in_specs=in_specs,
        out_specs=pl.BlockSpec((batch_tile, dim_code), lambda i: (i, 0)),
        compiler_params=pltpu.CompilerParams(
            dimension_semantics=("parallel",)),
    )(*args)

    return out


def init_mapping_params(key, dim_z, dim_code):
    """Deterministic synthetic init (PyTorch-style fan-in uniform), weights
    stored as [in, out] for the kernel."""
    dims = [dim_z, 64, 128, 256, dim_code]
    params = {}
    for k in range(4):
        fan_in, fan_out = dims[k], dims[k + 1]
        key, kw, kb = jax.random.split(key, 3)
        bound = 1.0 / jnp.sqrt(fan_in)
        params[f"w{k}"] = jax.random.uniform(
            kw, (fan_in, fan_out), jnp.float32, -bound, bound)
        params[f"b{k}"] = jax.random.uniform(
            kb, (1, fan_out), jnp.float32, -bound, bound)
    return params


def mapping_reference(z, params):
    """Pure-JAX f32 reference of the same forward pass."""
    h = z
    for k in range(3):
        h = h @ params[f"w{k}"] + params[f"b{k}"]
        h = jnp.where(h > 0, h, LEAKY_SLOPE * h)
    return h @ params["w3"] + params["b3"]


if __name__ == "__main__":
    # Small shapes consistent with the module: dim_z=32, dim_code=16,
    # n_tissues=3 (unused in forward), dropout=None.
    dim_z, dim_code = 32, 16

    key = jax.random.PRNGKey(0)
    key, kp = jax.random.split(key)
    params = init_mapping_params(kp, dim_z, dim_code)

    # batch=8 exercises the single-step path; batch=300 exercises the
    # two-step path with a ragged (non-divisible) last block.
    for batch in (8, 300):
        key, kz = jax.random.split(key)
        z = jax.random.normal(kz, (batch, dim_z), jnp.float32)
        ref = mapping_reference(z, params)

        # Exact-f32 path.
        out_f32 = jax.block_until_ready(mapping_forward(z, params, use_bf16=False))
        assert out_f32.shape == (batch, dim_code)
        assert jnp.allclose(out_f32, ref, atol=1e-4, rtol=1e-4), "f32 mismatch vs reference"

        # Default bf16-operand path (f32 accumulate) — relaxed tolerance.
        out_bf16 = jax.block_until_ready(mapping_forward(z, params))
        assert out_bf16.shape == (batch, dim_code)
        assert jnp.allclose(out_bf16, ref, atol=2e-2, rtol=2e-2), "bf16 mismatch vs reference"

    print("KERNEL_OK")
</pallas_src>

<mosaic_0001>
module attributes {stable_mosaic.version = 11 : i64} {
  func.func @kernel(%arg0: i32, %arg1: memref<8x32xf32, #tpu.memory_space<vmem>>, %arg2: memref<32x128xf32, #tpu.memory_space<vmem>>, %arg3: memref<1x128xf32, #tpu.memory_space<vmem>>, %arg4: memref<128x128xf32, #tpu.memory_space<vmem>>, %arg5: memref<1x128xf32, #tpu.memory_space<vmem>>, %arg6: memref<128x256xf32, #tpu.memory_space<vmem>>, %arg7: memref<1x256xf32, #tpu.memory_space<vmem>>, %arg8: memref<256x16xf32, #tpu.memory_space<vmem>>, %arg9: memref<1x16xf32, #tpu.memory_space<vmem>>, %arg10: memref<8x16xf32, #tpu.memory_space<vmem>>) attributes {dimension_semantics = [#tpu.dimension_semantics<parallel>], iteration_bounds = array<i64: 1>, scalar_prefetch = 0 : i64, scratch_operands = 0 : i64, tpu.core_type = #tpu.core_type<tc>, window_params = [{transform_indices = @transform_0, window_bounds = array<i64: 8, 32>}, {pipeline_mode = #tpu.pipeline_mode<synchronous>, transform_indices = @transform_1, window_bounds = array<i64: 32, 128>}, {pipeline_mode = #tpu.pipeline_mode<synchronous>, transform_indices = @transform_2, window_bounds = array<i64: 1, 128>}, {pipeline_mode = #tpu.pipeline_mode<synchronous>, transform_indices = @transform_3, window_bounds = array<i64: 128, 128>}, {pipeline_mode = #tpu.pipeline_mode<synchronous>, transform_indices = @transform_4, window_bounds = array<i64: 1, 128>}, {pipeline_mode = #tpu.pipeline_mode<synchronous>, transform_indices = @transform_5, window_bounds = array<i64: 128, 256>}, {pipeline_mode = #tpu.pipeline_mode<synchronous>, transform_indices = @transform_6, window_bounds = array<i64: 1, 256>}, {pipeline_mode = #tpu.pipeline_mode<synchronous>, transform_indices = @transform_7, window_bounds = array<i64: 256, 16>}, {pipeline_mode = #tpu.pipeline_mode<synchronous>, transform_indices = @transform_8, window_bounds = array<i64: 1, 16>}, {transform_indices = @transform_9, window_bounds = array<i64: 8, 16>}]} {
    %c0 = arith.constant 0 : index
    %c0_0 = arith.constant 0 : index
    %0 = vector.load %arg1[%c0, %c0_0] : memref<8x32xf32, #tpu.memory_space<vmem>>, vector<8x32xf32>
    %c0_1 = arith.constant 0 : index
    %c0_2 = arith.constant 0 : index
    %1 = vector.load %arg2[%c0_1, %c0_2] : memref<32x128xf32, #tpu.memory_space<vmem>>, vector<32x128xf32>
    %cst = arith.constant dense<0.000000e+00> : vector<8x128xf32>
    %2 = tpu.matmul %0, %1, %cst {dimension_numbers = #tpu.dot_dimension_numbers<[1], [0], [0], [1], [0, 0, 1, 1], [], []>} : vector<8x32xf32>, vector<32x128xf32>, vector<8x128xf32> -> vector<8x128xf32>
    %c0_3 = arith.constant 0 : index
    %c0_4 = arith.constant 0 : index
    %3 = vector.load %arg3[%c0_3, %c0_4] : memref<1x128xf32, #tpu.memory_space<vmem>>, vector<1x128xf32>
    %4 = vector.broadcast %3 : vector<1x128xf32> to vector<8x128xf32>
    %5 = arith.addf %2, %4 : vector<8x128xf32>
    %cst_5 = arith.constant 0.00999999977 : f32
    %6 = vector.broadcast %cst_5 : f32 to vector<8x128xf32>
    %7 = arith.mulf %6, %5 : vector<8x128xf32>
    %8 = arith.maximumf %5, %7 : vector<8x128xf32>
    %c0_6 = arith.constant 0 : index
    %c0_7 = arith.constant 0 : index
    %9 = vector.load %arg4[%c0_6, %c0_7] : memref<128x128xf32, #tpu.memory_space<vmem>>, vector<128x128xf32>
    %cst_8 = arith.constant dense<0.000000e+00> : vector<8x128xf32>
    %10 = tpu.matmul %8, %9, %cst_8 {dimension_numbers = #tpu.dot_dimension_numbers<[1], [0], [0], [1], [0, 0, 1, 1], [], []>} : vector<8x128xf32>, vector<128x128xf32>, vector<8x128xf32> -> vector<8x128xf32>
    %c0_9 = arith.constant 0 : index
    %c0_10 = arith.constant 0 : index
    %11 = vector.load %arg5[%c0_9, %c0_10] : memref<1x128xf32, #tpu.memory_space<vmem>>, vector<1x128xf32>
    %12 = vector.broadcast %11 : vector<1x128xf32> to vector<8x128xf32>
    %13 = arith.addf %10, %12 : vector<8x128xf32>
    %cst_11 = arith.constant 0.00999999977 : f32
    %14 = vector.broadcast %cst_11 : f32 to vector<8x128xf32>
    %15 = arith.mulf %14, %13 : vector<8x128xf32>
    %16 = arith.maximumf %13, %15 : vector<8x128xf32>
    %c0_12 = arith.constant 0 : index
    %c0_13 = arith.constant 0 : index
    %17 = vector.load %arg6[%c0_12, %c0_13] : memref<128x256xf32, #tpu.memory_space<vmem>>, vector<128x256xf32>
    %cst_14 = arith.constant dense<0.000000e+00> : vector<8x256xf32>
    %18 = tpu.matmul %16, %17, %cst_14 {dimension_numbers = #tpu.dot_dimension_numbers<[1], [0], [0], [1], [0, 0, 1, 1], [], []>} : vector<8x128xf32>, vector<128x256xf32>, vector<8x256xf32> -> vector<8x256xf32>
    %c0_15 = arith.constant 0 : index
    %c0_16 = arith.constant 0 : index
    %19 = vector.load %arg7[%c0_15, %c0_16] : memref<1x256xf32, #tpu.memory_space<vmem>>, vector<1x256xf32>
    %20 = vector.broadcast %19 : vector<1x256xf32> to vector<8x256xf32>
    %21 = arith.addf %18, %20 : vector<8x256xf32>
    %cst_17 = arith.constant 0.00999999977 : f32
    %22 = vector.broadcast %cst_17 : f32 to vector<8x256xf32>
    %23 = arith.mulf %22, %21 : vector<8x256xf32>
    %24 = arith.maximumf %21, %23 : vector<8x256xf32>
    %c0_18 = arith.constant 0 : index
    %c0_19 = arith.constant 0 : index
    %25 = vector.load %arg8[%c0_18, %c0_19] : memref<256x16xf32, #tpu.memory_space<vmem>>, vector<256x16xf32>
    %cst_20 = arith.constant dense<0.000000e+00> : vector<8x16xf32>
    %26 = tpu.matmul %24, %25, %cst_20 {dimension_numbers = #tpu.dot_dimension_numbers<[1], [0], [0], [1], [0, 0, 1, 1], [], []>} : vector<8x256xf32>, vector<256x16xf32>, vector<8x16xf32> -> vector<8x16xf32>
    %c0_21 = arith.constant 0 : index
    %c0_22 = arith.constant 0 : index
    %27 = vector.load %arg9[%c0_21, %c0_22] : memref<1x16xf32, #tpu.memory_space<vmem>>, vector<1x16xf32>
    %28 = vector.broadcast %27 : vector<1x16xf32> to vector<8x16xf32>
    %29 = arith.addf %26, %28 : vector<8x16xf32>
    %c0_23 = arith.constant 0 : index
    %c0_24 = arith.constant 0 : index
    %30 = vector.load %arg10[%c0_23, %c0_24] : memref<8x16xf32, #tpu.memory_space<vmem>>, vector<8x16xf32>
    tpu.vector_store %arg10[%c0_23, %c0_24], %29 {strides = array<i32>} : memref<8x16xf32, #tpu.memory_space<vmem>>, vector<8x16xf32>,
    return
  }
  func.func @transform_0(%arg0: i32) -> (i32, i32) {
    %c0_i32 = arith.constant 0 : i32
    %c0_i32_0 = arith.constant 0 : i32
    return %arg0, %c0_i32 : i32, i32
  }
  func.func @transform_1(%arg0: i32) -> (i32, i32) {
    %c0_i32 = arith.constant 0 : i32
    %c0_i32_0 = arith.constant 0 : i32
    %c0_i32_1 = arith.constant 0 : i32
    return %c0_i32, %c0_i32_0 : i32, i32
  }
  func.func @transform_2(%arg0: i32) -> (i32, i32) {
    %c0_i32 = arith.constant 0 : i32
    %c0_i32_0 = arith.constant 0 : i32
    %c0_i32_1 = arith.constant 0 : i32
    return %c0_i32, %c0_i32_0 : i32, i32
  }
  func.func @transform_3(%arg0: i32) -> (i32, i32) {
    %c0_i32 = arith.constant 0 : i32
    %c0_i32_0 = arith.constant 0 : i32
    %c0_i32_1 = arith.constant 0 : i32
    return %c0_i32, %c0_i32_0 : i32, i32
  }
  func.func @transform_4(%arg0: i32) -> (i32, i32) {
    %c0_i32 = arith.constant 0 : i32
    %c0_i32_0 = arith.constant 0 : i32
    %c0_i32_1 = arith.constant 0 : i32
    return %c0_i32, %c0_i32_0 : i32, i32
  }
  func.func @transform_5(%arg0: i32) -> (i32, i32) {
    %c0_i32 = arith.constant 0 : i32
    %c0_i32_0 = arith.constant 0 : i32
    %c0_i32_1 = arith.constant 0 : i32
    return %c0_i32, %c0_i32_0 : i32, i32
  }
  func.func @transform_6(%arg0: i32) -> (i32, i32) {
    %c0_i32 = arith.constant 0 : i32
    %c0_i32_0 = arith.constant 0 : i32
    %c0_i32_1 = arith.constant 0 : i32
    return %c0_i32, %c0_i32_0 : i32, i32
  }
  func.func @transform_7(%arg0: i32) -> (i32, i32) {
    %c0_i32 = arith.constant 0 : i32
    %c0_i32_0 = arith.constant 0 : i32
    %c0_i32_1 = arith.constant 0 : i32
    return %c0_i32, %c0_i32_0 : i32, i32
  }
  func.func @transform_8(%arg0: i32) -> (i32, i32) {
    %c0_i32 = arith.constant 0 : i32
    %c0_i32_0 = arith.constant 0 : i32
    %c0_i32_1 = arith.constant 0 : i32
    return %c0_i32, %c0_i32_0 : i32, i32
  }
  func.func @transform_9(%arg0: i32) -> (i32, i32) {
    %c0_i32 = arith.constant 0 : i32
    %c0_i32_0 = arith.constant 0 : i32
    return %arg0, %c0_i32 : i32, i32
  }
}

</mosaic_0001>

<llo_original>
// kernel: mapping_forward.1
$region0: #{mapping_forward.1}
  #allocation0 [shape = 'u32[]', space=smem, size = 0x4, offset = 0x4, fixed_abs, tag = 'smem constant byte address 0x4 - core index']
  #allocation1 [shape = 'u32[144,128]{1,0:T(1,128)}', space=vmem, size = 0x12000, scoped, tag = 'internal scratch']
  %s0 = inlined_call_operand.vmem [shape: f32[8,32], index: 0, kind: input, shape index: {}]
  %s1 = inlined_call_operand.vmem [shape: f32[32,128], index: 1, kind: input, shape index: {}]
  %s2 = inlined_call_operand.vmem [shape: f32[1,128], index: 2, kind: input, shape index: {}]
  %s3 = inlined_call_operand.vmem [shape: f32[128,128], index: 3, kind: input, shape index: {}]
  %s4 = inlined_call_operand.vmem [shape: f32[1,128], index: 4, kind: input, shape index: {}]
  %s5 = inlined_call_operand.vmem [shape: f32[128,256], index: 5, kind: input, shape index: {}]
  %s6 = inlined_call_operand.vmem [shape: f32[1,256], index: 6, kind: input, shape index: {}]
  %s7 = inlined_call_operand.vmem [shape: f32[256,16], index: 7, kind: input, shape index: {}]
  %s8 = inlined_call_operand.vmem [shape: f32[1,16], index: 8, kind: input, shape index: {}]
  %s9 = inlined_call_operand.hbm [shape: f32[8,16], index: 9, kind: output, shape index: {}]
  %s10 = sld [smem:[#allocation0]]
  $region46: #{mapping_forward.1} parent=0
    _
  %s12 = ssub.s32 1, %s10
  %s13 = scalar_select 0, %s12, %s10
  $region1: #{mapping_forward.1} parent=0
    #allocation2 [shape = 'u8[4096]{0}', space=vmem, size = 0x1000, scoped, tag = 'output window, operand 0, single buffered']
    #allocation3 [shape = 's32[1]{0}', space=sflag, size = 0x4, scoped, tag = 'scoped memory for mapping_forward.1']
    %14 = vsyncpa [#allocation3], 0
    // Predicated region
    $region2: #{mapping_forward.1} parent=1 // pred_check
      _
    $region3: #{mapping_forward.1} parent=1 // pred_check_branch
      %16 = sbr.rel (0) target = $region5
    $region4: #{mapping_forward.1} parent=1 // pred_region
      _
    $region5: #{mapping_forward.1} parent=1 // pred_fallthru
      _
    // Predicated region
    $region6: #{mapping_forward.1} parent=1 // pred_check
      _
    $region7: #{mapping_forward.1} parent=1 // pred_check_branch
      %18 = sbr.rel (0) target = $region9
    $region8: #{mapping_forward.1} parent=1 // pred_region
      _
    $region9: #{mapping_forward.1} parent=1 // pred_fallthru
      _
    // Predicated region
    $region10: #{mapping_forward.1} parent=1 // pred_check
      _
    $region11: #{mapping_forward.1} parent=1 // pred_check_branch
      %20 = sbr.rel (0) target = $region13
    $region12: #{mapping_forward.1} parent=1 // pred_region
      _
    $region13: #{mapping_forward.1} parent=1 // pred_fallthru
      _
    // Predicated region
    $region14: #{mapping_forward.1} parent=1 // pred_check
      _
    $region15: #{mapping_forward.1} parent=1 // pred_check_branch
      %22 = sbr.rel (0) target = $region17
    $region16: #{mapping_forward.1} parent=1 // pred_region
      _
    $region17: #{mapping_forward.1} parent=1 // pred_fallthru
      _
    // Predicated region
    $region18: #{mapping_forward.1} parent=1 // pred_check
      _
    $region19: #{mapping_forward.1} parent=1 // pred_check_branch
      %24 = sbr.rel (0) target = $region21
    $region20: #{mapping_forward.1} parent=1 // pred_region
      _
    $region21: #{mapping_forward.1} parent=1 // pred_fallthru
      _
    // Predicated region
    $region22: #{mapping_forward.1} parent=1 // pred_check
      _
    $region23: #{mapping_forward.1} parent=1 // pred_check_branch
      %26 = sbr.rel (0) target = $region25
    $region24: #{mapping_forward.1} parent=1 // pred_region
      _
    $region25: #{mapping_forward.1} parent=1 // pred_fallthru
      _
    // Predicated region
    $region26: #{mapping_forward.1} parent=1 // pred_check
      _
    $region27: #{mapping_forward.1} parent=1 // pred_check_branch
      %28 = sbr.rel (0) target = $region29
    $region28: #{mapping_forward.1} parent=1 // pred_region
      _
    $region29: #{mapping_forward.1} parent=1 // pred_fallthru
      _
    // Predicated region
    $region30: #{mapping_forward.1} parent=1 // pred_check
      _
    $region31: #{mapping_forward.1} parent=1 // pred_check_branch
      %30 = sbr.rel (0) target = $region33
    $region32: #{mapping_forward.1} parent=1 // pred_region
      _
    $region33: #{mapping_forward.1} parent=1 // pred_fallthru
      _
    // Predicated region
    $region34: #{mapping_forward.1} parent=1 // pred_check
      _
    $region35: #{mapping_forward.1} parent=1 // pred_check_branch
      %32 = sbr.rel (0) target = $region37
    $region36: #{mapping_forward.1} parent=1 // pred_region
      _
    $region37: #{mapping_forward.1} parent=1 // pred_fallthru
      _
    %v33 = vld [vmem:[%s0] sm:$0xff]
    %v34 = vld [vmem:[%s1] sm:$0xff]
    %v35 = vld [vmem:[%s1 + $0x8] sm:$0xff]
    %v36 = vld [vmem:[%s1 + $0x10] sm:$0xff]
    %v37 = vld [vmem:[%s1 + $0x18] sm:$0xff]
    %v38 = vld [vmem:[%s2] sm:$0x1]
    %v40 = vlaneseq
    %v41 = vshrl.u32 %v40, 7
    %v42 = vsub.s32 0, %v41
    %v43 = vrot.slane %v38, %v42
    %vm45 = vcmask 261120
    %v47 = vsel %vm45, %v33, 0
    %49 = vmatprep.subr.mxu0 0.0
    %50 = vmatpush1.msra.mxu0 0.0
    %51 = vmatprep.subr.mxu0 0.0
    %52 = vmatpush1.msra.mxu0 0.0
    %53 = vmatprep.subr.mxu0 0.0
    %54 = vmatpush1.msra.mxu0 0.0
    %55 = vmatprep.subr.mxu0 0.0
    %56 = vmatpush1.msra.mxu0 0.0
    %57 = vmatprep.subr.mxu0 0.0
    %58 = vmatpush1.msra.mxu0 0.0
    %59 = vmatprep.subr.mxu0 0.0
    %60 = vmatpush1.msra.mxu0 0.0
    %61 = vmatprep.subr.mxu0 0.0
    %62 = vmatpush1.msra.mxu0 0.0
    %63 = vmatprep.subr.mxu0 0.0
    %64 = vmatpush1.msra.mxu0 0.0
    %65 = vmatprep.subr.mxu0 0.0
    %66 = vmatpush1.msra.mxu0 0.0
    %67 = vmatprep.subr.mxu0 0.0
    %68 = vmatpush1.msra.mxu0 0.0
    %69 = vmatprep.subr.mxu0 0.0
    %70 = vmatpush1.msra.mxu0 0.0
    %71 = vmatprep.subr.mxu0 0.0
    %72 = vmatpush1.msra.mxu0 0.0
    %73 = vmatprep.subr.mxu0 0.0
    %74 = vmatpush1.msra.mxu0 %v37
    %75 = vmatprep.subr.mxu0 0.0
    %76 = vmatpush1.msra.mxu0 %v36
    %77 = vmatprep.subr.mxu0 0.0
    %78 = vmatpush1.msra.mxu0 %v35
    %79 = vmatprep.subr.mxu0 0.0
    %80 = vmatpush1.msra.mxu0 %v34
    %81 = vmatprep.subr.mxu0 0.0
    %82 = vmatpush2.msra.mxu0 0.0
    %83 = vmatprep.subr.mxu0 0.0
    %84 = vmatpush2.msra.mxu0 0.0
    %85 = vmatprep.subr.mxu0 0.0
    %86 = vmatpush2.msra.mxu0 0.0
    %87 = vmatprep.subr.mxu0 0.0
    %88 = vmatpush2.msra.mxu0 0.0
    %89 = vmatprep.subr.mxu0 0.0
    %90 = vmatpush2.msra.mxu0 0.0
    %91 = vmatprep.subr.mxu0 0.0
    %92 = vmatpush2.msra.mxu0 0.0
    %93 = vmatprep.subr.mxu0 0.0
    %94 = vmatpush2.msra.mxu0 0.0
    %95 = vmatprep.subr.mxu0 0.0
    %96 = vmatpush2.msra.mxu0 0.0
    %97 = vmatprep.subr.mxu0 0.0
    %98 = vmatpush2.msra.mxu0 0.0
    %99 = vmatprep.subr.mxu0 0.0
    %100 = vmatpush2.msra.mxu0 0.0
    %101 = vmatprep.subr.mxu0 0.0
    %102 = vmatpush2.msra.mxu0 0.0
    %103 = vmatprep.subr.mxu0 0.0
    %104 = vmatpush2.msra.mxu0 0.0
    %105 = vmatprep.subr.mxu0 0.0
    %106 = vmatpush2.msra.mxu0 0.0
    %107 = vmatprep.subr.mxu0 0.0
    %108 = vmatpush2.msra.mxu0 0.0
    %109 = vmatprep.subr.mxu0 0.0
    %110 = vmatpush2.msra.mxu0 0.0
    %111 = vmatprep.subr.mxu0 0.0
    %112 = vmatpush2.msra.mxu0 0.0
    %113 = vmatprep.mubr.f32.mxu0 0.0
    %114 = vmatmul.mubr.f32.gmra.mxu0 %v47
    %v115 = vpop.f32.mrf.mxu0
    %v116 = vadd.f32 %v43, %v115
    %v117 = vpop.f32.mrf.mxu0
    %118 = vdwg.mxu0
    %v119 = vmul.f32 %v116, 0.01
    %v120 = vmax.f32 %v116, %v119
    %v121 = vld [vmem:[%s3] sm:$0xff]
    %v122 = vld [vmem:[%s3 + $0x8] sm:$0xff]
    %v123 = vld [vmem:[%s3 + $0x10] sm:$0xff]
    %v124 = vld [vmem:[%s3 + $0x18] sm:$0xff]
    %v125 = vld [vmem:[%s3 + $0x20] sm:$0xff]
    %v126 = vld [vmem:[%s3 + $0x28] sm:$0xff]
    %v127 = vld [vmem:[%s3 + $0x30] sm:$0xff]
    %v128 = vld [vmem:[%s3 + $0x38] sm:$0xff]
    %v129 = vld [vmem:[%s3 + $0x40] sm:$0xff]
    %v130 = vld [vmem:[%s3 + $0x48] sm:$0xff]
    %v131 = vld [vmem:[%s3 + $0x50] sm:$0xff]
    %v132 = vld [vmem:[%s3 + $0x58] sm:$0xff]
    %v133 = vld [vmem:[%s3 + $0x60] sm:$0xff]
    %v134 = vld [vmem:[%s3 + $0x68] sm:$0xff]
    %v135 = vld [vmem:[%s3 + $0x70] sm:$0xff]
    %v136 = vld [vmem:[%s3 + $0x78] sm:$0xff]
    %v137 = vld [vmem:[%s4] sm:$0x1]
    %v139 = vlaneseq
    %v140 = vshrl.u32 %v139, 7
    %v141 = vsub.s32 0, %v140
    %v142 = vrot.slane %v137, %v141
    %144 = vmatprep.subr.mxu0 0.0
    %145 = vmatpush1.msra.mxu0 %v136
    %146 = vmatprep.subr.mxu0 0.0
    %147 = vmatpush1.msra.mxu0 %v135
    %148 = vmatprep.subr.mxu0 0.0
    %149 = vmatpush1.msra.mxu0 %v134
    %150 = vmatprep.subr.mxu0 0.0
    %151 = vmatpush1.msra.mxu0 %v133
    %152 = vmatprep.subr.mxu0 0.0
    %153 = vmatpush1.msra.mxu0 %v132
    %154 = vmatprep.subr.mxu0 0.0
    %155 = vmatpush1.msra.mxu0 %v131
    %156 = vmatprep.subr.mxu0 0.0
    %157 = vmatpush1.msra.mxu0 %v130
    %158 = vmatprep.subr.mxu0 0.0
    %159 = vmatpush1.msra.mxu0 %v129
    %160 = vmatprep.subr.mxu0 0.0
    %161 = vmatpush1.msra.mxu0 %v128
    %162 = vmatprep.subr.mxu0 0.0
    %163 = vmatpush1.msra.mxu0 %v127
    %164 = vmatprep.subr.mxu0 0.0
    %165 = vmatpush1.msra.mxu0 %v126
    %166 = vmatprep.subr.mxu0 0.0
    %167 = vmatpush1.msra.mxu0 %v125
    %168 = vmatprep.subr.mxu0 0.0
    %169 = vmatpush1.msra.mxu0 %v124
    %170 = vmatprep.subr.mxu0 0.0
    %171 = vmatpush1.msra.mxu0 %v123
    %172 = vmatprep.subr.mxu0 0.0
    %173 = vmatpush1.msra.mxu0 %v122
    %174 = vmatprep.subr.mxu0 0.0
    %175 = vmatpush1.msra.mxu0 %v121
    %176 = vmatprep.subr.mxu0 0.0
    %177 = vmatpush2.msra.mxu0 0.0
    %178 = vmatprep.subr.mxu0 0.0
    %179 = vmatpush2.msra.mxu0 0.0
    %180 = vmatprep.subr.mxu0 0.0
    %181 = vmatpush2.msra.mxu0 0.0
    %182 = vmatprep.subr.mxu0 0.0
    %183 = vmatpush2.msra.mxu0 0.0
    %184 = vmatprep.subr.mxu0 0.0
    %185 = vmatpush2.msra.mxu0 0.0
    %186 = vmatprep.subr.mxu0 0.0
    %187 = vmatpush2.msra.mxu0 0.0
    %188 = vmatprep.subr.mxu0 0.0
    %189 = vmatpush2.msra.mxu0 0.0
    %190 = vmatprep.subr.mxu0 0.0
    %191 = vmatpush2.msra.mxu0 0.0
    %192 = vmatprep.subr.mxu0 0.0
    %193 = vmatpush2.msra.mxu0 0.0
    %194 = vmatprep.subr.mxu0 0.0
    %195 = vmatpush2.msra.mxu0 0.0
    %196 = vmatprep.subr.mxu0 0.0
    %197 = vmatpush2.msra.mxu0 0.0
    %198 = vmatprep.subr.mxu0 0.0
    %199 = vmatpush2.msra.mxu0 0.0
    %200 = vmatprep.subr.mxu0 0.0
    %201 = vmatpush2.msra.mxu0 0.0
    %202 = vmatprep.subr.mxu0 0.0
    %203 = vmatpush2.msra.mxu0 0.0
    %204 = vmatprep.subr.mxu0 0.0
    %205 = vmatpush2.msra.mxu0 0.0
    %206 = vmatprep.subr.mxu0 0.0
    %207 = vmatpush2.msra.mxu0 0.0
    %208 = vmatprep.mubr.f32.mxu0 0.0
    %209 = vmatmul.mubr.f32.gmra.mxu0 %v120
    %v210 = vpop.f32.mrf.mxu0
    %v211 = vadd.f32 %v142, %v210
    %v212 = vpop.f32.mrf.mxu0
    %213 = vdwg.mxu0
    %v214 = vmul.f32 %v211, 0.01
    %v215 = vmax.f32 %v211, %v214
    %v216 = vld [vmem:[%s5] sm:$0xff]
    %v217 = vld [vmem:[%s5 + $0x8] sm:$0xff]
    %v218 = vld [vmem:[%s5 + $0x10] sm:$0xff]
    %v219 = vld [vmem:[%s5 + $0x18] sm:$0xff]
    %v220 = vld [vmem:[%s5 + $0x20] sm:$0xff]
    %v221 = vld [vmem:[%s5 + $0x28] sm:$0xff]
    %v222 = vld [vmem:[%s5 + $0x30] sm:$0xff]
    %v223 = vld [vmem:[%s5 + $0x38] sm:$0xff]
    %v224 = vld [vmem:[%s5 + $0x40] sm:$0xff]
    %v225 = vld [vmem:[%s5 + $0x48] sm:$0xff]
    %v226 = vld [vmem:[%s5 + $0x50] sm:$0xff]
    %v227 = vld [vmem:[%s5 + $0x58] sm:$0xff]
    %v228 = vld [vmem:[%s5 + $0x60] sm:$0xff]
    %v229 = vld [vmem:[%s5 + $0x68] sm:$0xff]
    %v230 = vld [vmem:[%s5 + $0x70] sm:$0xff]
    %v231 = vld [vmem:[%s5 + $0x78] sm:$0xff]
    %v232 = vld [vmem:[%s5 + $0x80] sm:$0xff]
    %v233 = vld [vmem:[%s5 + $0x88] sm:$0xff]
    %v234 = vld [vmem:[%s5 + $0x90] sm:$0xff]
    %v235 = vld [vmem:[%s5 + $0x98] sm:$0xff]
    %v236 = vld [vmem:[%s5 + $0xa0] sm:$0xff]
    %v237 = vld [vmem:[%s5 + $0xa8] sm:$0xff]
    %v238 = vld [vmem:[%s5 + $0xb0] sm:$0xff]
    %v239 = vld [vmem:[%s5 + $0xb8] sm:$0xff]
    %v240 = vld [vmem:[%s5 + $0xc0] sm:$0xff]
    %v241 = vld [vmem:[%s5 + $0xc8] sm:$0xff]
    %v242 = vld [vmem:[%s5 + $0xd0] sm:$0xff]
    %v243 = vld [vmem:[%s5 + $0xd8] sm:$0xff]
    %v244 = vld [vmem:[%s5 + $0xe0] sm:$0xff]
    %v245 = vld [vmem:[%s5 + $0xe8] sm:$0xff]
    %v246 = vld [vmem:[%s5 + $0xf0] sm:$0xff]
    %v247 = vld [vmem:[%s5 + $0xf8] sm:$0xff]
    %v248 = vld [vmem:[%s6] sm:$0x3]
    %v250 = vlaneseq
    %v251 = vshrl.u32 %v250, 7
    %v252 = vsub.s32 0, %v251
    %v253 = vrot.slane %v248, %v252
    %v254 = vlaneseq
    %v255 = vshrl.u32 %v254, 7
    %v256 = vsub.s32 1, %v255
    %v257 = vrot.slane %v248, %v256
    %260 = vmatprep.subr.mxu0 %v247
    %261 = vmatpush1.msra.mxu0 %v246
    %262 = vmatprep.subr.mxu0 %v245
    %263 = vmatpush1.msra.mxu0 %v244
    %264 = vmatprep.subr.mxu0 %v243
    %265 = vmatpush1.msra.mxu0 %v242
    %266 = vmatprep.subr.mxu0 %v241
    %267 = vmatpush1.msra.mxu0 %v240
    %268 = vmatprep.subr.mxu0 %v239
    %269 = vmatpush1.msra.mxu0 %v238
    %270 = vmatprep.subr.mxu0 %v237
    %271 = vmatpush1.msra.mxu0 %v236
    %272 = vmatprep.subr.mxu0 %v235
    %273 = vmatpush1.msra.mxu0 %v234
    %274 = vmatprep.subr.mxu0 %v233
    %275 = vmatpush1.msra.mxu0 %v232
    %276 = vmatprep.subr.mxu0 %v231
    %277 = vmatpush1.msra.mxu0 %v230
    %278 = vmatprep.subr.mxu0 %v229
    %279 = vmatpush1.msra.mxu0 %v228
    %280 = vmatprep.subr.mxu0 %v227
    %281 = vmatpush1.msra.mxu0 %v226
    %282 = vmatprep.subr.mxu0 %v225
    %283 = vmatpush1.msra.mxu0 %v224
    %284 = vmatprep.subr.mxu0 %v223
    %285 = vmatpush1.msra.mxu0 %v222
    %286 = vmatprep.subr.mxu0 %v221
    %287 = vmatpush1.msra.mxu0 %v220
    %288 = vmatprep.subr.mxu0 %v219
    %289 = vmatpush1.msra.mxu0 %v218
    %290 = vmatprep.subr.mxu0 %v217
    %291 = vmatpush1.msra.mxu0 %v216
    %292 = vmatprep.subr.mxu0 0.0
    %293 = vmatpush2.msra.mxu0 0.0
    %294 = vmatprep.subr.mxu0 0.0
    %295 = vmatpush2.msra.mxu0 0.0
    %296 = vmatprep.subr.mxu0 0.0
    %297 = vmatpush2.msra.mxu0 0.0
    %298 = vmatprep.subr.mxu0 0.0
    %299 = vmatpush2.msra.mxu0 0.0
    %300 = vmatprep.subr.mxu0 0.0
    %301 = vmatpush2.msra.mxu0 0.0
    %302 = vmatprep.subr.mxu0 0.0
    %303 = vmatpush2.msra.mxu0 0.0
    %304 = vmatprep.subr.mxu0 0.0
    %305 = vmatpush2.msra.mxu0 0.0
    %306 = vmatprep.subr.mxu0 0.0
    %307 = vmatpush2.msra.mxu0 0.0
    %308 = vmatprep.subr.mxu0 0.0
    %309 = vmatpush2.msra.mxu0 0.0
    %310 = vmatprep.subr.mxu0 0.0
    %311 = vmatpush2.msra.mxu0 0.0
    %312 = vmatprep.subr.mxu0 0.0
    %313 = vmatpush2.msra.mxu0 0.0
    %314 = vmatprep.subr.mxu0 0.0
    %315 = vmatpush2.msra.mxu0 0.0
    %316 = vmatprep.subr.mxu0 0.0
    %317 = vmatpush2.msra.mxu0 0.0
    %318 = vmatprep.subr.mxu0 0.0
    %319 = vmatpush2.msra.mxu0 0.0
    %320 = vmatprep.subr.mxu0 0.0
    %321 = vmatpush2.msra.mxu0 0.0
    %322 = vmatprep.subr.mxu0 0.0
    %323 = vmatpush2.msra.mxu0 0.0
    %324 = vmatprep.mubr.f32.mxu0 0.0
    %325 = vmatmul.mubr.f32.gmra.mxu0 %v215
    %v326 = vpop.f32.mrf.mxu0
    %v327 = vadd.f32 %v253, %v326
    %v328 = vpop.f32.mrf.mxu0
    %v329 = vadd.f32 %v257, %v328
    %330 = vdwg.mxu0
    %v331 = vmul.f32 %v327, 0.01
    %v332 = vmul.f32 %v329, 0.01
    %v333 = vmax.f32 %v327, %v331
    %v334 = vmax.f32 %v329, %v332
    %v335 = vld [vmem:[%s7] sm:$0xff]
    %v336 = vld [vmem:[%s7 + $0x8] sm:$0xff]
    %v337 = vld [vmem:[%s7 + $0x10] sm:$0xff]
    %v338 = vld [vmem:[%s7 + $0x18] sm:$0xff]
    %v339 = vld [vmem:[%s7 + $0x20] sm:$0xff]
    %v340 = vld [vmem:[%s7 + $0x28] sm:$0xff]
    %v341 = vld [vmem:[%s7 + $0x30] sm:$0xff]
    %v342 = vld [vmem:[%s7 + $0x38] sm:$0xff]
    %v343 = vld [vmem:[%s7 + $0x40] sm:$0xff]
    %v344 = vld [vmem:[%s7 + $0x48] sm:$0xff]
    %v345 = vld [vmem:[%s7 + $0x50] sm:$0xff]
    %v346 = vld [vmem:[%s7 + $0x58] sm:$0xff]
    %v347 = vld [vmem:[%s7 + $0x60] sm:$0xff]
    %v348 = vld [vmem:[%s7 + $0x68] sm:$0xff]
    %v349 = vld [vmem:[%s7 + $0x70] sm:$0xff]
    %v350 = vld [vmem:[%s7 + $0x78] sm:$0xff]
    %v351 = vld [vmem:[%s7 + $0x80] sm:$0xff]
    %v352 = vld [vmem:[%s7 + $0x88] sm:$0xff]
    %v353 = vld [vmem:[%s7 + $0x90] sm:$0xff]
    %v354 = vld [vmem:[%s7 + $0x98] sm:$0xff]
    %v355 = vld [vmem:[%s7 + $0xa0] sm:$0xff]
    %v356 = vld [vmem:[%s7 + $0xa8] sm:$0xff]
    %v357 = vld [vmem:[%s7 + $0xb0] sm:$0xff]
    %v358 = vld [vmem:[%s7 + $0xb8] sm:$0xff]
    %v359 = vld [vmem:[%s7 + $0xc0] sm:$0xff]
    %v360 = vld [vmem:[%s7 + $0xc8] sm:$0xff]
    %v361 = vld [vmem:[%s7 + $0xd0] sm:$0xff]
    %v362 = vld [vmem:[%s7 + $0xd8] sm:$0xff]
    %v363 = vld [vmem:[%s7 + $0xe0] sm:$0xff]
    %v364 = vld [vmem:[%s7 + $0xe8] sm:$0xff]
    %v365 = vld [vmem:[%s7 + $0xf0] sm:$0xff]
    %v366 = vld [vmem:[%s7 + $0xf8] sm:$0xff]
    %v367 = vld [vmem:[%s8] sm:$0x1]
    %v369 = vlaneseq
    %v370 = vshrl.u32 %v369, 7
    %v371 = vsub.s32 0, %v370
    %v372 = vrot.slane %v367, %v371
    %374 = vmatprep.subr.mxu0 0.0
    %375 = vmatpush1.msra.mxu0 %v350
    %376 = vmatprep.subr.mxu0 0.0
    %377 = vmatpush1.msra.mxu0 %v349
    %378 = vmatprep.subr.mxu0 0.0
    %379 = vmatpush1.msra.mxu0 %v348
    %380 = vmatprep.subr.mxu0 0.0
    %381 = vmatpush1.msra.mxu0 %v347
    %382 = vmatprep.subr.mxu0 0.0
    %383 = vmatpush1.msra.mxu0 %v346
    %384 = vmatprep.subr.mxu0 0.0
    %385 = vmatpush1.msra.mxu0 %v345
    %386 = vmatprep.subr.mxu0 0.0
    %387 = vmatpush1.msra.mxu0 %v344
    %388 = vmatprep.subr.mxu0 0.0
    %389 = vmatpush1.msra.mxu0 %v343
    %390 = vmatprep.subr.mxu0 0.0
    %391 = vmatpush1.msra.mxu0 %v342
    %392 = vmatprep.subr.mxu0 0.0
    %393 = vmatpush1.msra.mxu0 %v341
    %394 = vmatprep.subr.mxu0 0.0
    %395 = vmatpush1.msra.mxu0 %v340
    %396 = vmatprep.subr.mxu0 0.0
    %397 = vmatpush1.msra.mxu0 %v339
    %398 = vmatprep.subr.mxu0 0.0
    %399 = vmatpush1.msra.mxu0 %v338
    %400 = vmatprep.subr.mxu0 0.0
    %401 = vmatpush1.msra.mxu0 %v337
    %402 = vmatprep.subr.mxu0 0.0
    %403 = vmatpush1.msra.mxu0 %v336
    %404 = vmatprep.subr.mxu0 0.0
    %405 = vmatpush1.msra.mxu0 %v335
    %406 = vmatprep.subr.mxu0 0.0
    %407 = vmatpush2.msra.mxu0 %v366
    %408 = vmatprep.subr.mxu0 0.0
    %409 = vmatpush2.msra.mxu0 %v365
    %410 = vmatprep.subr.mxu0 0.0
    %411 = vmatpush2.msra.mxu0 %v364
    %412 = vmatprep.subr.mxu0 0.0
    %413 = vmatpush2.msra.mxu0 %v363
    %414 = vmatprep.subr.mxu0 0.0
    %415 = vmatpush2.msra.mxu0 %v362
    %416 = vmatprep.subr.mxu0 0.0
    %417 = vmatpush2.msra.mxu0 %v361
    %418 = vmatprep.subr.mxu0 0.0
    %419 = vmatpush2.msra.mxu0 %v360
    %420 = vmatprep.subr.mxu0 0.0
    %421 = vmatpush2.msra.mxu0 %v359
    %422 = vmatprep.subr.mxu0 0.0
    %423 = vmatpush2.msra.mxu0 %v358
    %424 = vmatprep.subr.mxu0 0.0
    %425 = vmatpush2.msra.mxu0 %v357
    %426 = vmatprep.subr.mxu0 0.0
    %427 = vmatpush2.msra.mxu0 %v356
    %428 = vmatprep.subr.mxu0 0.0
    %429 = vmatpush2.msra.mxu0 %v355
    %430 = vmatprep.subr.mxu0 0.0
    %431 = vmatpush2.msra.mxu0 %v354
    %432 = vmatprep.subr.mxu0 0.0
    %433 = vmatpush2.msra.mxu0 %v353
    %434 = vmatprep.subr.mxu0 0.0
    %435 = vmatpush2.msra.mxu0 %v352
    %436 = vmatprep.subr.mxu0 0.0
    %437 = vmatpush2.msra.mxu0 %v351
    %438 = vmatprep.mubr.f32.mxu0 %v334
    %439 = vmatmul.mubr.f32.gmra.mxu0 %v333
    %v440 = vpop.f32.mrf.mxu0
    %v441 = vadd.f32 %v372, %v440
    %v442 = vpop.f32.mrf.mxu0
    %443 = vdwg.mxu0
    %vm444 = vcmask 130048
    %445 = vst.msk [vmem:[#allocation2] sm:$0xff] %vm444, %v441
    // Predicated region
    $region38: #{mapping_forward.1} parent=1 // pred_check
      _
    $region39: #{mapping_forward.1} parent=1 // pred_check_branch
      %447 = sbr.rel (0) target = $region41
    $region40: #{mapping_forward.1} parent=1 // pred_region
      %s449 = ssub.s32 128, 128
      %450 = vsyncadd [#allocation3], %s449
      %s452 = sshll.u32 [#allocation2], 4
      %s453 = int_to_ptr.vmem [resolvable:$true] %s452
      %455 = dma.vmem_to_hbm [thread:$0]  %s453, 128, %s9, [#allocation3]
    $region41: #{mapping_forward.1} parent=1 // pred_fallthru
      _
    // Predicated region
    $region42: #{mapping_forward.1} parent=1 // pred_check
      _
    $region43: #{mapping_forward.1} parent=1 // pred_check_branch
      %457 = sbr.rel (0) target = $region45
    $region44: #{mapping_forward.1} parent=1 // pred_region
      %458 = dma.done [#allocation3], 128
    $region45: #{mapping_forward.1} parent=1 // pred_fallthru
      _
    %459 = vsyncpa [#allocation3], 1

</llo_original>
